<compile_context>
chip_gen: v7x
topology: tpu7x:2x2x1
jax: 0.10.0
libtpu: 0.0.40
codegen_flags: <defaults>
</compile_context>

<pallas_src>
import functools
import math
from dataclasses import dataclass
from typing import List, Tuple

import jax
import jax.numpy as jnp
from jax import lax
from jax.experimental import pallas as pl
from jax.experimental.pallas import tpu as pltpu


# --------------------------------------------------------------------------
# helpers
# --------------------------------------------------------------------------
_NEG_BIG = -1e30  # finite "minus infinity" used for ragged-vocab masking


def _round_up(x: int, m: int) -> int:
    return ((x + m - 1) // m) * m


def _cdiv(a: int, b: int) -> int:
    return (a + b - 1) // b


def _vmem_capacity_bytes() -> int:
    """Physical VMEM per TensorCore; conservative (v7x) fallback if unknown."""
    try:
        info = pltpu.get_tpu_info()
        cap = getattr(info, "vmem_capacity_bytes", None)
        if cap:
            return int(cap)
    except Exception:
        pass
    return 64 * 1024 * 1024


def _gen_params():
    """Generation-aware block budgets and scoped-VMEM ceiling."""
    cap = _vmem_capacity_bytes()
    if cap >= 96 * 1024 * 1024:
        # v5e / v6e: 128 MiB physical VMEM -> big blocks amortize per-step overhead
        return dict(ce_tv_cap=4096, ce_block_budget=6 << 20,
                    res_block_budget=4 << 20, vmem_ceiling=96 << 20)
    # v7x: 64 MiB physical per TensorCore -> smaller budget; rely on the
    # 2-TC "parallel" row-axis split + 3.2 TB/s HBM for throughput.
    return dict(ce_tv_cap=2048, ce_block_budget=3 << 20,
                res_block_budget=2 << 20, vmem_ceiling=44 << 20)


def _pick_row_tile(n_rows: int, row_bytes: int, max_bytes: int,
                   max_rows: int = 1024) -> int:
    """Largest row tile (multiple of 8) keeping one input block <= max_bytes."""
    rows = (max_bytes // max(1, row_bytes)) // 8 * 8
    rows = max(8, min(max_rows, rows))
    if n_rows <= rows:
        rows = max(8, _round_up(n_rows, 8))
    return rows


# --------------------------------------------------------------------------
# Kernel 1: tiled softmax cross-entropy (online softmax over the vocab axis)
#   - logits stream un-padded; target logit is a precomputed (tm,1) side input
# --------------------------------------------------------------------------
def _ce_tiled_kernel(logits_ref, tgt_ref, tlogit_ref, out_ref, m_sc, l_sc, *,
                     tv, n_vocab_tiles, v_total):
    j = pl.program_id(1)

    @pl.when(j == 0)
    def _():
        m_sc[...] = jnp.full_like(m_sc, -jnp.inf)
        l_sc[...] = jnp.zeros_like(l_sc)

    x = logits_ref[...]                                   # native dtype (tm, tv)
    tm = x.shape[0]

    # Ragged last vocab tile: mask garbage lanes to -1e30 (skipped statically
    # when V is tile-aligned).  Mask + max stay in the native dtype (bf16 vregs
    # on v6e/v7x); only the exp path below is widened to f32.
    if v_total % tv != 0:
        lane = lax.broadcasted_iota(jnp.int32, (1, tv), 1)
        x = jnp.where(lane < (v_total - j * tv), x,
                      jnp.asarray(_NEG_BIG, x.dtype))

    tile_max = jnp.max(x, axis=-1, keepdims=True).astype(jnp.float32)  # (tm,1)
    m_prev = m_sc[...]
    m_new = jnp.maximum(m_prev, tile_max)
    # TODO(synk): on v7x the lane reduce of exp could be offloaded to the idle
    # MXU (dot against a ones column, f32 accumulate) to free VALU slots.
    p_sum = jnp.sum(jnp.exp(x.astype(jnp.float32) - m_new),
                    axis=-1, keepdims=True)
    l_sc[...] = l_sc[...] * jnp.exp(m_prev - m_new) + p_sum
    m_sc[...] = m_new

    @pl.when(j == n_vocab_tiles - 1)
    def _():
        tgt = tgt_ref[...]                                # (tm,1) int32, -1 == pad
        lse = m_sc[...] + jnp.log(l_sc[...])
        per_row = lse - tlogit_ref[...]                   # (tm,1)
        # negative targets == padding rows / ignore_index (torch default -100)
        per_row = jnp.where(tgt < 0, 0.0, per_row)
        partial = jnp.sum(per_row)
        sub = lax.broadcasted_iota(jnp.int32, (1, 8, 128), 1)
        lane = lax.broadcasted_iota(jnp.int32, (1, 8, 128), 2)
        out_ref[...] = jnp.where((sub == 0) & (lane == 0), partial, 0.0)


def _ce_loss_mean(logits, target_ids):
    """nn.CrossEntropyLoss(reduction='mean'); negative targets are ignored."""
    v = logits.shape[-1]
    logits2d = logits.reshape(-1, v)
    tgt2d = target_ids.reshape(-1, 1).astype(jnp.int32)
    n = logits2d.shape[0]

    gp = _gen_params()
    tv = min(_round_up(v, 128), gp["ce_tv_cap"])
    n_vocab_tiles = _cdiv(v, tv)

    itemsize = jnp.dtype(logits.dtype).itemsize
    tm = _pick_row_tile(n, tv * itemsize, max_bytes=gp["ce_block_budget"])
    n_row_tiles = _cdiv(n, tm)
    n_pad = n_row_tiles * tm

    # Hoisted target-logit gather (one element per row; clip guards ignore ids).
    tsafe = jnp.clip(tgt2d, 0, v - 1)
    tlogit = jnp.take_along_axis(logits2d, tsafe, axis=-1).astype(jnp.float32)

    # Only the tiny per-row vectors are padded; the logits stream un-padded and
    # the ragged last row tile is neutralized by the tgt<0 mask in-kernel.
    tgt_p = jnp.pad(tgt2d, ((0, n_pad - n), (0, 0)), constant_values=-1)
    tlog_p = jnp.pad(tlogit, ((0, n_pad - n), (0, 0)))

    blk_in = tm * tv * itemsize
    blk_f32 = tm * tv * 4
    vmem_limit = int(min(gp["vmem_ceiling"],
                         max(32 << 20, 2 * blk_in + 4 * blk_f32 + (2 << 20))))

    kernel = functools.partial(_ce_tiled_kernel, tv=tv,
                               n_vocab_tiles=n_vocab_tiles, v_total=v)
    partials = pl.pallas_call(
        kernel,
        out_shape=jax.ShapeDtypeStruct((n_row_tiles, 8, 128), jnp.float32),
        grid_spec=pltpu.PrefetchScalarGridSpec(
            num_scalar_prefetch=0,
            grid=(n_row_tiles, n_vocab_tiles),
            in_specs=[
                pl.BlockSpec((tm, tv), lambda i, j: (i, j)),
                pl.BlockSpec((tm, 1), lambda i, j: (i, 0)),
                pl.BlockSpec((tm, 1), lambda i, j: (i, 0)),
            ],
            out_specs=pl.BlockSpec((1, 8, 128), lambda i, j: (i, 0, 0)),
            scratch_shapes=[pltpu.VMEM((tm, 1), jnp.float32)] * 2,
        ),
        compiler_params=pltpu.CompilerParams(
            dimension_semantics=("parallel", "arbitrary"),
            vmem_limit_bytes=vmem_limit),
    )(logits2d, tgt_p, tlog_p)

    n_valid = jnp.maximum(jnp.sum((tgt2d >= 0).astype(jnp.int32)), 1)
    return jnp.sum(partials) / n_valid.astype(jnp.float32)


# --------------------------------------------------------------------------
# Kernel 2: tiled normalized-MSE residual loss
#   F.mse_loss(F.normalize(recon, dim=-1), F.normalize(orig, dim=-1))
# --------------------------------------------------------------------------
def _residual_tiled_kernel(o_ref, r_ref, out_ref, *, n_valid):
    i = pl.program_id(0)
    o = o_ref[...].astype(jnp.float32)                    # (tm, d)
    r = r_ref[...].astype(jnp.float32)
    tm = o.shape[0]

    def _l2n(x):
        # torch F.normalize: x / max(||x||_2, 1e-12) == x * rsqrt(max(sumsq, 1e-24))
        return x * lax.rsqrt(jnp.maximum(jnp.sum(x * x, axis=-1, keepdims=True),
                                         1e-24))

    d = _l2n(r) - _l2n(o)
    sq = jnp.sum(d * d, axis=-1, keepdims=True)            # (tm, 1)
    # rows >= n_valid (ragged last row tile, un-padded inputs) are masked out;
    # any garbage (even NaN/inf) in those rows stays per-row and is dropped here.
    row = lax.broadcasted_iota(jnp.int32, (tm, 1), 0) + i * tm
    partial = jnp.sum(jnp.where(row < n_valid, sq, 0.0))
    sub = lax.broadcasted_iota(jnp.int32, (1, 8, 128), 1)
    lane = lax.broadcasted_iota(jnp.int32, (1, 8, 128), 2)
    out_ref[...] = jnp.where((sub == 0) & (lane == 0), partial, 0.0)


def _residual_mse(original, reconstructed):
    d = original.shape[-1]
    o2d = original.reshape(-1, d)
    r2d = reconstructed.reshape(-1, d)
    n = o2d.shape[0]

    gp = _gen_params()
    itemsize = jnp.dtype(original.dtype).itemsize
    tm = _pick_row_tile(n, d * itemsize, max_bytes=gp["res_block_budget"])
    n_row_tiles = _cdiv(n, tm)

    blk_in = tm * d * itemsize
    blk_f32 = tm * d * 4
    vmem_limit = int(min(gp["vmem_ceiling"],
                         max(32 << 20, 4 * blk_in + 4 * blk_f32 + (2 << 20))))

    # TODO(synk): for d < 128 (demo d=32) pack 128/d rows per lane row with a
    # segmented (MXU) per-row reduction to fill all lanes; current layout leaves
    # lanes idle (low priority whenever production d >= 128).
    kernel = functools.partial(_residual_tiled_kernel, n_valid=n)
    partials = pl.pallas_call(
        kernel,
        out_shape=jax.ShapeDtypeStruct((n_row_tiles, 8, 128), jnp.float32),
        grid_spec=pltpu.PrefetchScalarGridSpec(
            num_scalar_prefetch=0,
            grid=(n_row_tiles,),
            in_specs=[pl.BlockSpec((tm, d), lambda i: (i, 0)),
                      pl.BlockSpec((tm, d), lambda i: (i, 0))],
            out_specs=pl.BlockSpec((1, 8, 128), lambda i: (i, 0, 0)),
        ),
        compiler_params=pltpu.CompilerParams(
            dimension_semantics=("parallel",),
            vmem_limit_bytes=vmem_limit),
    )(o2d, r2d)

    return jnp.sum(partials) / float(n * d)


# --------------------------------------------------------------------------
# Single fused device launch: one jit, one host transfer per step
# --------------------------------------------------------------------------
@jax.jit
def _compute_losses(logits, target_ids, original_activations,
                    reconstructed_activations):
    ce = _ce_loss_mean(logits, target_ids)
    res = _residual_mse(original_activations, reconstructed_activations)
    return jnp.stack([ce, res])


# --------------------------------------------------------------------------
# Module port (scalar glue mirrors the PyTorch .item()-based bookkeeping)
# --------------------------------------------------------------------------
@dataclass
class CompressionState:
    centroids: jnp.ndarray
    compression_factors: jnp.ndarray
    original_tokens: jnp.ndarray


def _sigmoid(x: float) -> float:
    return 1.0 / (1.0 + math.exp(-x))


class CompressionAwareLanguageModelLoss:
    def __init__(self, quality_weight=0.6, compression_weight=0.3,
                 residual_weight=0.1, min_quality_threshold=0.3,
                 target_compression_ratio=3.0, quality_warmup_steps=50,
                 ce_loss_scale=20.0):
        self.quality_weight = quality_weight
        self.compression_weight = compression_weight
        self.residual_weight = residual_weight
        self.min_quality_threshold = min_quality_threshold
        self.target_compression_ratio = target_compression_ratio
        self.quality_warmup_steps = quality_warmup_steps
        self.ce_loss_scale = ce_loss_scale
        self.step_counter = 0
        self.ema_ce_loss = None
        self.ema_alpha = 0.9

    def __call__(self, logits, target_ids,
                 compression_states: List[Tuple[CompressionState, jnp.ndarray]],
                 original_activations, reconstructed_activations):
        self.step_counter += 1
        quality_warmup = min(self.step_counter / self.quality_warmup_steps, 1.0)

        # --- both Pallas reductions in one launch, single host sync ---
        vals = jax.device_get(_compute_losses(
            logits, target_ids, original_activations, reconstructed_activations))
        ce_loss_f = float(vals[0])
        residual_f = float(vals[1])

        if self.ema_ce_loss is None:
            self.ema_ce_loss = ce_loss_f
        else:
            self.ema_ce_loss = (self.ema_ce_loss * self.ema_alpha
                                + ce_loss_f * (1 - self.ema_alpha))

        ce_scale = max(self.ce_loss_scale, self.ema_ce_loss * 1.5)
        base_quality = 1.0 - min(ce_loss_f / ce_scale, 1.0)
        quality_metric = base_quality * quality_warmup
        current_threshold = self.min_quality_threshold * (1.0 - quality_warmup * 0.5)

        if quality_metric < current_threshold:
            penalty_factor = (current_threshold - quality_metric) / current_threshold
            quality_penalty = 2.0 * _sigmoid(penalty_factor * 5.0)
        else:
            quality_penalty = 0.0

        total_original_size = sum(int(state.original_tokens.size)
                                  for state, _ in compression_states)
        total_compressed_size = sum(int(state.centroids.size)
                                    for state, _ in compression_states)
        compression_ratio = (total_original_size / total_compressed_size
                             if total_compressed_size > 0 else 1.0)

        if compression_ratio >= self.target_compression_ratio:
            compression_loss = 0.1
        else:
            ratio_factor = compression_ratio / self.target_compression_ratio
            compression_loss = 1.0 - _sigmoid(ratio_factor * 5.0)

        effective_quality_weight = self.quality_weight * (1.0 + quality_penalty)
        effective_compression_weight = (
            self.compression_weight
            * (0.5 if compression_ratio >= self.target_compression_ratio else 1.0)
            * (1.0 - quality_warmup * 0.3))
        effective_residual_weight = self.residual_weight * (
            2.0 if quality_metric < current_threshold else 1.0)

        total_loss = ((1.0 - quality_metric) * effective_quality_weight
                      + compression_loss * effective_compression_weight
                      + residual_f * effective_residual_weight)

        # TODO(synk): forward-only port -- gradient flow through the host-side
        # scalar bookkeeping (as in the .item()-based PyTorch code) is not preserved.
        metrics = {
            'total_loss': float(total_loss),
            'ce_loss': ce_loss_f,
            'quality_metric': quality_metric,
            'compression_ratio': compression_ratio,
            'compression_loss': float(compression_loss),
            'residual_loss': residual_f,
            'quality_penalty': float(quality_penalty),
            'effective_quality_weight': effective_quality_weight,
            'effective_compression_weight': effective_compression_weight,
            'effective_residual_weight': effective_residual_weight,
            'ce_scale': ce_scale,
            'current_threshold': current_threshold,
        }
        return total_loss, metrics


# --------------------------------------------------------------------------
# Demo / smoke test
# --------------------------------------------------------------------------
if __name__ == "__main__":
    key = jax.random.PRNGKey(0)
    k1, k2, k3, k4, k5 = jax.random.split(key, 5)

    B, T, V, D = 2, 8, 128, 32

    logits = jax.random.normal(k1, (B, T, V), dtype=jnp.float32)
    target_ids = jax.random.randint(k2, (B, T), 0, V, dtype=jnp.int32)
    original_activations = jax.random.normal(k3, (B, T, D), dtype=jnp.float32)
    reconstructed_activations = original_activations + 0.1 * jax.random.normal(
        k4, (B, T, D), dtype=jnp.float32)

    # Two synthetic compression states (only numel counts are used).
    state_a = CompressionState(
        centroids=jnp.zeros((4, D), jnp.float32),
        compression_factors=jnp.ones((4,), jnp.float32),
        original_tokens=jnp.zeros((12, D), jnp.float32),
    )
    state_b = CompressionState(
        centroids=jnp.zeros((8, D), jnp.float32),
        compression_factors=jnp.ones((8,), jnp.float32),
        original_tokens=jnp.zeros((20, D), jnp.float32),
    )
    clusters_a = jax.random.randint(k5, (12,), 0, 4, dtype=jnp.int32)
    clusters_b = jax.random.randint(k5, (20,), 0, 8, dtype=jnp.int32)
    compression_states = [(state_a, clusters_a), (state_b, clusters_b)]

    loss_fn = CompressionAwareLanguageModelLoss()
    total_loss, metrics = loss_fn(logits, target_ids, compression_states,
                                  original_activations, reconstructed_activations)

    # light correctness check against a pure-JAX reference
    lg = logits.reshape(-1, V).astype(jnp.float32)
    tg = target_ids.reshape(-1)
    ce_ref = float(jnp.mean(jax.nn.logsumexp(lg, axis=-1)
                            - jnp.take_along_axis(lg, tg[:, None], axis=-1)[:, 0]))

    def _nrm(x):
        x = x.astype(jnp.float32)
        return x / jnp.maximum(jnp.linalg.norm(x, axis=-1, keepdims=True), 1e-12)

    res_ref = float(jnp.mean((_nrm(reconstructed_activations)
                              - _nrm(original_activations)) ** 2))

    assert abs(metrics['ce_loss'] - ce_ref) <= 1e-3 + 1e-3 * abs(ce_ref)
    assert abs(metrics['residual_loss'] - res_ref) <= 1e-5 + 1e-3 * abs(res_ref)

    jax.block_until_ready(_compute_losses(logits, target_ids,
                                          original_activations,
                                          reconstructed_activations))
    print("KERNEL_OK")
</pallas_src>

<mosaic_0001>
module attributes {stable_mosaic.version = 11 : i64} {
  func.func @_ce_tiled_kernel(%arg0: i32, %arg1: i32, %arg2: memref<16x128xf32, #tpu.memory_space<vmem>>, %arg3: memref<16x1xi32, #tpu.memory_space<vmem>>, %arg4: memref<16x1xf32, #tpu.memory_space<vmem>>, %arg5: memref<1x8x128xf32, #tpu.memory_space<vmem>>, %arg6: memref<16x1xf32, #tpu.memory_space<vmem>>, %arg7: memref<16x1xf32, #tpu.memory_space<vmem>>) attributes {dimension_semantics = [#tpu.dimension_semantics<parallel>, #tpu.dimension_semantics<arbitrary>], iteration_bounds = array<i64: 1, 1>, scalar_prefetch = 0 : i64, scratch_operands = 2 : i64, tpu.core_type = #tpu.core_type<tc>, window_params = [{transform_indices = @transform_0, window_bounds = array<i64: 16, 128>}, {transform_indices = @transform_1, window_bounds = array<i64: 16, 1>}, {transform_indices = @transform_2, window_bounds = array<i64: 16, 1>}, {transform_indices = @transform_3, window_bounds = array<i64: 1, 8, 128>}]} {
    %c0_i32 = arith.constant 0 : i32
    %0 = arith.cmpi eq, %arg1, %c0_i32 : i32
    %1 = arith.extui %0 : i1 to i32
    %c0_i32_0 = arith.constant 0 : i32
    %2 = arith.cmpi ne, %1, %c0_i32_0 : i32
    scf.if %2 {
      %cst_13 = arith.constant 0xFF800000 : f32
      %23 = vector.broadcast %cst_13 : f32 to vector<16x1xf32>
      %c0_14 = arith.constant 0 : index
      %c0_15 = arith.constant 0 : index
      %24 = vector.load %arg6[%c0_14, %c0_15] : memref<16x1xf32, #tpu.memory_space<vmem>>, vector<16x1xf32>
      tpu.vector_store %arg6[%c0_14, %c0_15], %23 {strides = array<i32>} : memref<16x1xf32, #tpu.memory_space<vmem>>, vector<16x1xf32>,
      %cst_16 = arith.constant 0.000000e+00 : f32
      %25 = vector.broadcast %cst_16 : f32 to vector<16x1xf32>
      %c0_17 = arith.constant 0 : index
      %c0_18 = arith.constant 0 : index
      %26 = vector.load %arg7[%c0_17, %c0_18] : memref<16x1xf32, #tpu.memory_space<vmem>>, vector<16x1xf32>
      tpu.vector_store %arg7[%c0_17, %c0_18], %25 {strides = array<i32>} : memref<16x1xf32, #tpu.memory_space<vmem>>, vector<16x1xf32>,
    } else {
    }
    %c0 = arith.constant 0 : index
    %c0_1 = arith.constant 0 : index
    %3 = vector.load %arg2[%c0, %c0_1] : memref<16x128xf32, #tpu.memory_space<vmem>>, vector<16x128xf32>
    %cst = arith.constant dense<0xFF800000> : vector<16xf32>
    %4 = vector.multi_reduction <maximumf>, %3, %cst [1] : vector<16x128xf32> to vector<16xf32>
    %5 = vector.shape_cast %4 : vector<16xf32> to vector<16x1xf32>
    %c0_2 = arith.constant 0 : index
    %c0_3 = arith.constant 0 : index
    %6 = vector.load %arg6[%c0_2, %c0_3] : memref<16x1xf32, #tpu.memory_space<vmem>>, vector<16x1xf32>
    %7 = arith.maximumf %6, %5 : vector<16x1xf32>
    %8 = vector.broadcast %7 : vector<16x1xf32> to vector<16x128xf32>
    %9 = arith.subf %3, %8 : vector<16x128xf32>
    %10 = math.exp %9 : vector<16x128xf32>
    %cst_4 = arith.constant dense<0.000000e+00> : vector<16xf32>
    %11 = vector.multi_reduction <add>, %10, %cst_4 [1] : vector<16x128xf32> to vector<16xf32>
    %12 = vector.shape_cast %11 : vector<16xf32> to vector<16x1xf32>
    %c0_5 = arith.constant 0 : index
    %c0_6 = arith.constant 0 : index
    %13 = vector.load %arg7[%c0_5, %c0_6] : memref<16x1xf32, #tpu.memory_space<vmem>>, vector<16x1xf32>
    %14 = arith.subf %6, %7 : vector<16x1xf32>
    %15 = math.exp %14 : vector<16x1xf32>
    %16 = arith.mulf %13, %15 : vector<16x1xf32>
    %17 = arith.addf %16, %12 : vector<16x1xf32>
    %c0_7 = arith.constant 0 : index
    %c0_8 = arith.constant 0 : index
    %18 = vector.load %arg7[%c0_7, %c0_8] : memref<16x1xf32, #tpu.memory_space<vmem>>, vector<16x1xf32>
    tpu.vector_store %arg7[%c0_7, %c0_8], %17 {strides = array<i32>} : memref<16x1xf32, #tpu.memory_space<vmem>>, vector<16x1xf32>,
    %c0_9 = arith.constant 0 : index
    %c0_10 = arith.constant 0 : index
    %19 = vector.load %arg6[%c0_9, %c0_10] : memref<16x1xf32, #tpu.memory_space<vmem>>, vector<16x1xf32>
    tpu.vector_store %arg6[%c0_9, %c0_10], %7 {strides = array<i32>} : memref<16x1xf32, #tpu.memory_space<vmem>>, vector<16x1xf32>,
    %c0_i32_11 = arith.constant 0 : i32
    %20 = arith.cmpi eq, %arg1, %c0_i32_11 : i32
    %21 = arith.extui %20 : i1 to i32
    %c0_i32_12 = arith.constant 0 : i32
    %22 = arith.cmpi ne, %21, %c0_i32_12 : i32
    scf.if %22 {
      %c0_13 = arith.constant 0 : index
      %c0_14 = arith.constant 0 : index
      %23 = vector.load %arg3[%c0_13, %c0_14] : memref<16x1xi32, #tpu.memory_space<vmem>>, vector<16x1xi32>
      %c0_15 = arith.constant 0 : index
      %c0_16 = arith.constant 0 : index
      %24 = vector.load %arg6[%c0_15, %c0_16] : memref<16x1xf32, #tpu.memory_space<vmem>>, vector<16x1xf32>
      %c0_17 = arith.constant 0 : index
      %c0_18 = arith.constant 0 : index
      %25 = vector.load %arg7[%c0_17, %c0_18] : memref<16x1xf32, #tpu.memory_space<vmem>>, vector<16x1xf32>
      %26 = math.log %25 : vector<16x1xf32>
      %27 = arith.addf %24, %26 : vector<16x1xf32>
      %c0_19 = arith.constant 0 : index
      %c0_20 = arith.constant 0 : index
      %28 = vector.load %arg4[%c0_19, %c0_20] : memref<16x1xf32, #tpu.memory_space<vmem>>, vector<16x1xf32>
      %29 = arith.subf %27, %28 : vector<16x1xf32>
      %c0_i32_21 = arith.constant 0 : i32
      %30 = vector.broadcast %c0_i32_21 : i32 to vector<16x1xi32>
      %31 = arith.cmpi slt, %23, %30 : vector<16x1xi32>
      %cst_22 = arith.constant 0.000000e+00 : f32
      %32 = vector.broadcast %cst_22 : f32 to vector<16x1xf32>
      %33 = arith.select %31, %32, %29 : vector<16x1xi1>, vector<16x1xf32>
      %34 = vector.shape_cast %33 : vector<16x1xf32> to vector<1x16x1xf32>
      %cst_23 = arith.constant dense<0.000000e+00> : vector<1xf32>
      %35 = vector.multi_reduction <add>, %34, %cst_23 [1, 2] : vector<1x16x1xf32> to vector<1xf32>
      %36 = vector.shape_cast %35 : vector<1xf32> to vector<1x1x1xf32>
      %37 = vector.extract %36[0, 0, 0] : f32 from vector<1x1x1xf32>
      %38 = tpu.iota {dimensions = array<i32: 1>} : vector<1x8x128xi32>
      %39 = tpu.iota {dimensions = array<i32: 2>} : vector<1x8x128xi32>
      %c0_i32_24 = arith.constant 0 : i32
      %40 = vector.broadcast %c0_i32_24 : i32 to vector<1x8x128xi32>
      %41 = arith.cmpi eq, %38, %40 : vector<1x8x128xi32>
      %c0_i32_25 = arith.constant 0 : i32
      %42 = vector.broadcast %c0_i32_25 : i32 to vector<1x8x128xi32>
      %43 = arith.cmpi eq, %39, %42 : vector<1x8x128xi32>
      %44 = arith.andi %41, %43 : vector<1x8x128xi1>
      %cst_26 = arith.constant 0.000000e+00 : f32
      %45 = vector.broadcast %37 : f32 to vector<1x8x128xf32>
      %46 = vector.broadcast %cst_26 : f32 to vector<1x8x128xf32>
      %47 = arith.select %44, %45, %46 : vector<1x8x128xi1>, vector<1x8x128xf32>
      %c0_27 = arith.constant 0 : index
      %c0_28 = arith.constant 0 : index
      %c0_29 = arith.constant 0 : index
      %48 = vector.load %arg5[%c0_27, %c0_28, %c0_29] : memref<1x8x128xf32, #tpu.memory_space<vmem>>, vector<1x8x128xf32>
      tpu.vector_store %arg5[%c0_27, %c0_28, %c0_29], %47 {strides = array<i32>} : memref<1x8x128xf32, #tpu.memory_space<vmem>>, vector<1x8x128xf32>,
    } else {
    }
    return
  }
  func.func @transform_0(%arg0: i32, %arg1: i32) -> (i32, i32) {
    %c0_i32 = arith.constant 0 : i32
    return %arg0, %arg1 : i32, i32
  }
  func.func @transform_1(%arg0: i32, %arg1: i32) -> (i32, i32) {
    %c0_i32 = arith.constant 0 : i32
    %c0_i32_0 = arith.constant 0 : i32
    return %arg0, %c0_i32 : i32, i32
  }
  func.func @transform_2(%arg0: i32, %arg1: i32) -> (i32, i32) {
    %c0_i32 = arith.constant 0 : i32
    %c0_i32_0 = arith.constant 0 : i32
    return %arg0, %c0_i32 : i32, i32
  }
  func.func @transform_3(%arg0: i32, %arg1: i32) -> (i32, i32, i32) {
    %c0_i32 = arith.constant 0 : i32
    %c0_i32_0 = arith.constant 0 : i32
    %c0_i32_1 = arith.constant 0 : i32
    return %arg0, %c0_i32, %c0_i32_0 : i32, i32, i32
  }
}

module attributes {stable_mosaic.version = 11 : i64} {
  func.func @_residual_tiled_kernel(%arg0: i32, %arg1: memref<16x32xf32, #tpu.memory_space<vmem>>, %arg2: memref<16x32xf32, #tpu.memory_space<vmem>>, %arg3: memref<1x8x128xf32, #tpu.memory_space<vmem>>) attributes {dimension_semantics = [#tpu.dimension_semantics<parallel>], iteration_bounds = array<i64: 1>, scalar_prefetch = 0 : i64, scratch_operands = 0 : i64, tpu.core_type = #tpu.core_type<tc>, window_params = [{transform_indices = @transform_0, window_bounds = array<i64: 16, 32>}, {transform_indices = @transform_1, window_bounds = array<i64: 16, 32>}, {transform_indices = @transform_2, window_bounds = array<i64: 1, 8, 128>}]} {
    %c0 = arith.constant 0 : index
    %c0_0 = arith.constant 0 : index
    %0 = vector.load %arg1[%c0, %c0_0] : memref<16x32xf32, #tpu.memory_space<vmem>>, vector<16x32xf32>
    %c0_1 = arith.constant 0 : index
    %c0_2 = arith.constant 0 : index
    %1 = vector.load %arg2[%c0_1, %c0_2] : memref<16x32xf32, #tpu.memory_space<vmem>>, vector<16x32xf32>
    %2 = arith.mulf %1, %1 : vector<16x32xf32>
    %cst = arith.constant dense<0.000000e+00> : vector<16xf32>
    %3 = vector.multi_reduction <add>, %2, %cst [1] : vector<16x32xf32> to vector<16xf32>
    %4 = vector.shape_cast %3 : vector<16xf32> to vector<16x1xf32>
    %cst_3 = arith.constant 1.000000e-24 : f32
    %5 = vector.broadcast %cst_3 : f32 to vector<16x1xf32>
    %6 = arith.maximumf %4, %5 : vector<16x1xf32>
    %7 = math.rsqrt %6 : vector<16x1xf32>
    %8 = vector.broadcast %7 : vector<16x1xf32> to vector<16x32xf32>
    %9 = arith.mulf %1, %8 : vector<16x32xf32>
    %10 = arith.mulf %0, %0 : vector<16x32xf32>
    %cst_4 = arith.constant dense<0.000000e+00> : vector<16xf32>
    %11 = vector.multi_reduction <add>, %10, %cst_4 [1] : vector<16x32xf32> to vector<16xf32>
    %12 = vector.shape_cast %11 : vector<16xf32> to vector<16x1xf32>
    %cst_5 = arith.constant 1.000000e-24 : f32
    %13 = vector.broadcast %cst_5 : f32 to vector<16x1xf32>
    %14 = arith.maximumf %12, %13 : vector<16x1xf32>
    %15 = math.rsqrt %14 : vector<16x1xf32>
    %16 = vector.broadcast %15 : vector<16x1xf32> to vector<16x32xf32>
    %17 = arith.mulf %0, %16 : vector<16x32xf32>
    %18 = arith.subf %9, %17 : vector<16x32xf32>
    %19 = arith.mulf %18, %18 : vector<16x32xf32>
    %cst_6 = arith.constant dense<0.000000e+00> : vector<16xf32>
    %20 = vector.multi_reduction <add>, %19, %cst_6 [1] : vector<16x32xf32> to vector<16xf32>
    %21 = vector.shape_cast %20 : vector<16xf32> to vector<16x1xf32>
    %22 = tpu.iota {dimensions = array<i32: 0>} : vector<16x1xi32>
    %c16_i32 = arith.constant 16 : i32
    %23 = arith.muli %arg0, %c16_i32 : i32
    %24 = vector.broadcast %23 : i32 to vector<16x1xi32>
    %25 = arith.addi %22, %24 : vector<16x1xi32>
    %c16_i32_7 = arith.constant 16 : i32
    %26 = vector.broadcast %c16_i32_7 : i32 to vector<16x1xi32>
    %27 = arith.cmpi slt, %25, %26 : vector<16x1xi32>
    %cst_8 = arith.constant 0.000000e+00 : f32
    %28 = vector.broadcast %cst_8 : f32 to vector<16x1xf32>
    %29 = arith.select %27, %21, %28 : vector<16x1xi1>, vector<16x1xf32>
    %30 = vector.shape_cast %29 : vector<16x1xf32> to vector<1x16x1xf32>
    %cst_9 = arith.constant dense<0.000000e+00> : vector<1xf32>
    %31 = vector.multi_reduction <add>, %30, %cst_9 [1, 2] : vector<1x16x1xf32> to vector<1xf32>
    %32 = vector.shape_cast %31 : vector<1xf32> to vector<1x1x1xf32>
    %33 = vector.extract %32[0, 0, 0] : f32 from vector<1x1x1xf32>
    %34 = tpu.iota {dimensions = array<i32: 1>} : vector<1x8x128xi32>
    %35 = tpu.iota {dimensions = array<i32: 2>} : vector<1x8x128xi32>
    %c0_i32 = arith.constant 0 : i32
    %36 = vector.broadcast %c0_i32 : i32 to vector<1x8x128xi32>
    %37 = arith.cmpi eq, %34, %36 : vector<1x8x128xi32>
    %c0_i32_10 = arith.constant 0 : i32
    %38 = vector.broadcast %c0_i32_10 : i32 to vector<1x8x128xi32>
    %39 = arith.cmpi eq, %35, %38 : vector<1x8x128xi32>
    %40 = arith.andi %37, %39 : vector<1x8x128xi1>
    %cst_11 = arith.constant 0.000000e+00 : f32
    %41 = vector.broadcast %33 : f32 to vector<1x8x128xf32>
    %42 = vector.broadcast %cst_11 : f32 to vector<1x8x128xf32>
    %43 = arith.select %40, %41, %42 : vector<1x8x128xi1>, vector<1x8x128xf32>
    %c0_12 = arith.constant 0 : index
    %c0_13 = arith.constant 0 : index
    %c0_14 = arith.constant 0 : index
    %44 = vector.load %arg3[%c0_12, %c0_13, %c0_14] : memref<1x8x128xf32, #tpu.memory_space<vmem>>, vector<1x8x128xf32>
    tpu.vector_store %arg3[%c0_12, %c0_13, %c0_14], %43 {strides = array<i32>} : memref<1x8x128xf32, #tpu.memory_space<vmem>>, vector<1x8x128xf32>,
    return
  }
  func.func @transform_0(%arg0: i32) -> (i32, i32) {
    %c0_i32 = arith.constant 0 : i32
    %c0_i32_0 = arith.constant 0 : i32
    return %arg0, %c0_i32 : i32, i32
  }
  func.func @transform_1(%arg0: i32) -> (i32, i32) {
    %c0_i32 = arith.constant 0 : i32
    %c0_i32_0 = arith.constant 0 : i32
    return %arg0, %c0_i32 : i32, i32
  }
  func.func @transform_2(%arg0: i32) -> (i32, i32, i32) {
    %c0_i32 = arith.constant 0 : i32
    %c0_i32_0 = arith.constant 0 : i32
    %c0_i32_1 = arith.constant 0 : i32
    return %arg0, %c0_i32, %c0_i32_0 : i32, i32, i32
  }
}

</mosaic_0001>

<llo_original>
// kernel: _compute_losses.2
$region0: #{_compute_losses.2}
  #allocation0 [shape = 'u32[]', space=smem, size = 0x4, offset = 0x4, fixed_abs, tag = 'smem constant byte address 0x4 - core index']
  #allocation1 [shape = 'u32[144,128]{1,0:T(1,128)}', space=vmem, size = 0x12000, scoped, tag = 'internal scratch']
  #allocation2 [shape = 'f32[16,1]{1,0:T(8,128)}', space=vmem, size = 0x2000, scoped, tag = 'scratch operand']
  #allocation3 [shape = 'f32[16,1]{1,0:T(8,128)}', space=vmem, size = 0x2000, scoped, tag = 'scratch operand']
  %s0 = inlined_call_operand.vmem [shape: f32[16,128], index: 0, kind: input, shape index: {}]
  %s1 = inlined_call_operand.vmem [shape: s32[16,1], index: 1, kind: input, shape index: {}]
  %s2 = inlined_call_operand.vmem [shape: f32[16,1], index: 2, kind: input, shape index: {}]
  %s3 = inlined_call_operand.vmem [shape: f32[1,8,128], index: 3, kind: output, shape index: {}]
  %s4 = sld [smem:[#allocation0]]
  $region30: #{_compute_losses.2} parent=0
    _
  %s6 = ssub.s32 1, %s4
  %s7 = scalar_select 0, %s6, %s4
  // Predicated region
  $region2: #{_compute_losses.2} parent=0 // pred_check
    _
  $region3: #{_compute_losses.2} parent=0 // pred_check_branch
    %9 = sbr.rel (0) target = $region5
  $region4: #{_compute_losses.2} parent=0 // pred_region
    _
  $region5: #{_compute_losses.2} parent=0 // pred_fallthru
    _
  // Predicated region
  $region6: #{_compute_losses.2} parent=0 // pred_check
    _
  $region7: #{_compute_losses.2} parent=0 // pred_check_branch
    %11 = sbr.rel (0) target = $region9
  $region8: #{_compute_losses.2} parent=0 // pred_region
    _
  $region9: #{_compute_losses.2} parent=0 // pred_fallthru
    _
  // Predicated region
  $region10: #{_compute_losses.2} parent=0 // pred_check
    _
  $region11: #{_compute_losses.2} parent=0 // pred_check_branch
    %13 = sbr.rel (0) target = $region13
  $region12: #{_compute_losses.2} parent=0 // pred_region
    _
  $region13: #{_compute_losses.2} parent=0 // pred_fallthru
    _
  %p14 = scmp.eq.s32.totalorder 0, 0
  // Predicated region
  $region14: #{_compute_losses.2} parent=0 // pred_check
    %p15 = pneg %p14
  $region15: #{_compute_losses.2} parent=0 // pred_check_branch
    %17 = sbr.rel (%p15) target = $region17
  $region16: #{_compute_losses.2} parent=0 // pred_region
    %vm18 = vcmask 7168
    %19 = vst.msk [vmem:[#allocation2] sm:$0xff] %vm18, -inf
    %20 = vst.msk [vmem:[#allocation2 + $0x8] sm:$0xff] %vm18, -inf
    %21 = vst.msk [vmem:[#allocation3] sm:$0xff] %vm18, 0.0
    %22 = vst.msk [vmem:[#allocation3 + $0x8] sm:$0xff] %vm18, 0.0
  $region17: #{_compute_losses.2} parent=0 // pred_fallthru
    _
  %v23 = vld [vmem:[%s0] sm:$0xff]
  %v24 = vld [vmem:[%s0 + $0x8] sm:$0xff]
  %25 = vmax.xlane.f32.xlu0 %v23
  %v26 = vpop.xlane.xlu0 %25
  %27 = vmax.xlane.f32.xlu0 %v24
  %v28 = vpop.xlane.xlu0 %27
  %v29 = vld [vmem:[#allocation2] sm:$0xff]
  %v30 = vld [vmem:[#allocation2 + $0x8] sm:$0xff]
  %v31 = vmax.f32 %v29, %v26
  %v32 = vmax.f32 %v30, %v28
  %34 = vset.pattern.permute.xlu0 0
  %35 = vperm.xlu0 %34, %v31
  %v36 = vpop.permute.xlu0 %35
  %39 = vset.pattern.permute.xlu0 0
  %40 = vperm.xlu0 %39, %v32
  %v41 = vpop.permute.xlu0 %40
  %v43 = vsub.f32 %v23, %v36
  %v44 = vsub.f32 %v24, %v41
  %v45 = vmul.f32 %v43, 1.442695
  %v46 = vpow.pop %v45
  %v47 = vmul.f32 %v44, 1.442695
  %v48 = vpow.pop %v47
  %49 = vadd.xlane.f32.xlu0 %v46
  %v50 = vpop.xlane.xlu0 %49
  %51 = vadd.xlane.f32.xlu0 %v48
  %v52 = vpop.xlane.xlu0 %51
  %v53 = vld [vmem:[#allocation3] sm:$0xff]
  %v54 = vld [vmem:[#allocation3 + $0x8] sm:$0xff]
  %v55 = vsub.f32 %v29, %v31
  %v56 = vsub.f32 %v30, %v32
  %v57 = vmul.f32 %v55, 1.442695
  %v58 = vpow.pop %v57
  %v59 = vmul.f32 %v56, 1.442695
  %v60 = vpow.pop %v59
  %v61 = vmul.f32 %v53, %v58
  %v62 = vmul.f32 %v54, %v60
  %v63 = vadd.f32 %v61, %v50
  %v64 = vadd.f32 %v62, %v52
  %vm65 = vcmask 7168
  %66 = vst.msk [vmem:[#allocation3] sm:$0xff] %vm65, %v63
  %67 = vst.msk [vmem:[#allocation3 + $0x8] sm:$0xff] %vm65, %v64
  %68 = vst.msk [vmem:[#allocation2] sm:$0xff] %vm65, %v31
  %69 = vst.msk [vmem:[#allocation2 + $0x8] sm:$0xff] %vm65, %v32
  // Predicated region
  $region18: #{_compute_losses.2} parent=0 // pred_check
    %p70 = pneg %p14
  $region19: #{_compute_losses.2} parent=0 // pred_check_branch
    %72 = sbr.rel (%p70) target = $region21
  $region20: #{_compute_losses.2} parent=0 // pred_region
    %v73 = vld [vmem:[%s1] sm:$0xff]
    %v74 = vld [vmem:[%s1 + $0x8] sm:$0xff]
    %v75 = vld [vmem:[#allocation2] sm:$0xff]
    %v76 = vld [vmem:[#allocation2 + $0x8] sm:$0xff]
    %v77 = vld [vmem:[#allocation3] sm:$0xff]
    %v78 = vld [vmem:[#allocation3 + $0x8] sm:$0xff]
    %v79 = vlog2.pop %v77
    %v80 = vmul.f32 %v79, 0.6931472
    %v81 = vlog2.pop %v78
    %v82 = vmul.f32 %v81, 0.6931472
    %v83 = vadd.f32 %v75, %v80
    %v84 = vadd.f32 %v76, %v82
    %v85 = vld [vmem:[%s2] sm:$0xff]
    %v86 = vld [vmem:[%s2 + $0x8] sm:$0xff]
    %v87 = vsub.f32 %v83, %v85
    %v88 = vsub.f32 %v84, %v86
    %vm89 = vcmp.lt.s32.totalorder %v73, 0
    %vm90 = vcmp.lt.s32.totalorder %v74, 0
    %v91 = vsel %vm89, 0.0, %v87
    %v92 = vsel %vm90, 0.0, %v88
    %v93 = vsel %vm65, %v91, 0.0
    %v94 = vsel %vm65, %v92, 0.0
    %v95 = vadd.f32 %v93, %v94
    %96 = vadd.xlane.f32.xlu0 %v95
    %v97 = vpop.xlane.xlu0 %96
    %v98 = vrot.slane %v97, 4
    %v99 = vadd.f32 %v97, %v98
    %v100 = vrot.slane %v99, 2
    %v101 = vadd.f32 %v99, %v100
    %v102 = vrot.slane %v101, 1
    %v103 = vadd.f32 %v101, %v102
    %s104 = vtos %v103
    %v105 = vlaneseq
    %v106 = vshrl.u32 %v105, 7
    %v107 = vlaneseq
    %v108 = vand.u32 %v107, 127
    %vm109 = vcmp.eq.s32.totalorder %v106, 0
    %vm110 = vcmp.eq.s32.totalorder %v108, 0
    %vm111 = vmand %vm109, %vm110
    %v112 = vstv %s104
    %v113 = vsel %vm111, %v112, 0.0
    %114 = vst [vmem:[%s3] sm:$0xff] %v113
  $region21: #{_compute_losses.2} parent=0 // pred_fallthru
    _
  // Predicated region
  $region22: #{_compute_losses.2} parent=0 // pred_check
    _
  $region23: #{_compute_losses.2} parent=0 // pred_check_branch
    %116 = sbr.rel (0) target = $region25
  $region24: #{_compute_losses.2} parent=0 // pred_region
    _
  $region25: #{_compute_losses.2} parent=0 // pred_fallthru
    _
  // Predicated region
  $region26: #{_compute_losses.2} parent=0 // pred_check
    _
  $region27: #{_compute_losses.2} parent=0 // pred_check_branch
    %118 = sbr.rel (0) target = $region29
  $region28: #{_compute_losses.2} parent=0 // pred_region
    _
  $region29: #{_compute_losses.2} parent=0 // pred_fallthru
    _

// kernel: _compute_losses.3
$region0: #{_compute_losses.3}
  #allocation0 [shape = 'u32[]', space=smem, size = 0x4, offset = 0x4, fixed_abs, tag = 'smem constant byte address 0x4 - core index']
  #allocation1 [shape = 'u32[144,128]{1,0:T(1,128)}', space=vmem, size = 0x12000, scoped, tag = 'internal scratch']
  %s0 = inlined_call_operand.vmem [shape: f32[16,32], index: 0, kind: input, shape index: {}]
  %s1 = inlined_call_operand.vmem [shape: f32[16,32], index: 1, kind: input, shape index: {}]
  %s2 = inlined_call_operand.vmem [shape: f32[1,8,128], index: 2, kind: output, shape index: {}]
  %s3 = sld [smem:[#allocation0]]
  $region18: #{_compute_losses.3} parent=0
    _
  %s5 = ssub.s32 1, %s3
  %s6 = scalar_select 0, %s5, %s3
  // Predicated region
  $region2: #{_compute_losses.3} parent=0 // pred_check
    _
  $region3: #{_compute_losses.3} parent=0 // pred_check_branch
    %8 = sbr.rel (0) target = $region5
  $region4: #{_compute_losses.3} parent=0 // pred_region
    _
  $region5: #{_compute_losses.3} parent=0 // pred_fallthru
    _
  // Predicated region
  $region6: #{_compute_losses.3} parent=0 // pred_check
    _
  $region7: #{_compute_losses.3} parent=0 // pred_check_branch
    %10 = sbr.rel (0) target = $region9
  $region8: #{_compute_losses.3} parent=0 // pred_region
    _
  $region9: #{_compute_losses.3} parent=0 // pred_fallthru
    _
  %v11 = vld [vmem:[%s0] sm:$0xff]
  %v12 = vld [vmem:[%s0 + $0x8] sm:$0xff]
  %v13 = vld [vmem:[%s1] sm:$0xff]
  %v14 = vld [vmem:[%s1 + $0x8] sm:$0xff]
  %v15 = vmul.f32 %v13, %v13
  %v16 = vmul.f32 %v14, %v14
  %vm17 = vcmask 261120
  %v18 = vsel %vm17, %v15, 0.0
  %19 = vadd.xlane.f32.xlu0 %v18
  %v20 = vpop.xlane.xlu0 %19
  %v21 = vsel %vm17, %v16, 0.0
  %22 = vadd.xlane.f32.xlu0 %v21
  %v23 = vpop.xlane.xlu0 %22
  %v24 = vmax.f32 %v20, 1e-24
  %v25 = vmax.f32 %v23, 1e-24
  %v26 = vrsqrt.pop %v24
  %v27 = vrsqrt.pop %v25
  %v28 = vmul.f32 %v13, %v26
  %v29 = vmul.f32 %v14, %v27
  %v30 = vmul.f32 %v11, %v11
  %v31 = vmul.f32 %v12, %v12
  %v32 = vsel %vm17, %v30, 0.0
  %33 = vadd.xlane.f32.xlu0 %v32
  %v34 = vpop.xlane.xlu0 %33
  %v35 = vsel %vm17, %v31, 0.0
  %36 = vadd.xlane.f32.xlu0 %v35
  %v37 = vpop.xlane.xlu0 %36
  %v38 = vmax.f32 %v34, 1e-24
  %v39 = vmax.f32 %v37, 1e-24
  %v40 = vrsqrt.pop %v38
  %v41 = vrsqrt.pop %v39
  %v42 = vmul.f32 %v11, %v40
  %v43 = vmul.f32 %v12, %v41
  %v44 = vsub.f32 %v28, %v42
  %v45 = vsub.f32 %v29, %v43
  %v46 = vmul.f32 %v44, %v44
  %v47 = vmul.f32 %v45, %v45
  %v48 = vsel %vm17, %v46, 0.0
  %49 = vadd.xlane.f32.xlu0 %v48
  %v50 = vpop.xlane.xlu0 %49
  %v51 = vsel %vm17, %v47, 0.0
  %52 = vadd.xlane.f32.xlu0 %v51
  %v53 = vpop.xlane.xlu0 %52
  %v54 = vlaneseq
  %v55 = vshrl.u32 %v54, 7
  %v56 = vadd.s32 %v55, 8
  %s57 = smul.u32 0, 16
  %v58 = vstv %s57
  %v59 = vadd.s32 %v55, %v58
  %v60 = vadd.s32 %v56, %v58
  %vm61 = vcmp.lt.s32.totalorder %v59, 16
  %vm62 = vcmp.lt.s32.totalorder %v60, 16
  %v63 = vsel %vm61, %v50, 0.0
  %v64 = vsel %vm62, %v53, 0.0
  %vm65 = vcmask 7168
  %v66 = vsel %vm65, %v63, 0.0
  %v67 = vsel %vm65, %v64, 0.0
  %v68 = vadd.f32 %v66, %v67
  %69 = vadd.xlane.f32.xlu0 %v68
  %v70 = vpop.xlane.xlu0 %69
  %v71 = vrot.slane %v70, 4
  %v72 = vadd.f32 %v70, %v71
  %v73 = vrot.slane %v72, 2
  %v74 = vadd.f32 %v72, %v73
  %v75 = vrot.slane %v74, 1
  %v76 = vadd.f32 %v74, %v75
  %s77 = vtos %v76
  %v78 = vlaneseq
  %v79 = vand.u32 %v78, 127
  %vm80 = vcmp.eq.s32.totalorder %v55, 0
  %vm81 = vcmp.eq.s32.totalorder %v79, 0
  %vm82 = vmand %vm80, %vm81
  %v83 = vstv %s77
  %v84 = vsel %vm82, %v83, 0.0
  %85 = vst [vmem:[%s2] sm:$0xff] %v84
  // Predicated region
  $region10: #{_compute_losses.3} parent=0 // pred_check
    _
  $region11: #{_compute_losses.3} parent=0 // pred_check_branch
    %87 = sbr.rel (0) target = $region13
  $region12: #{_compute_losses.3} parent=0 // pred_region
    _
  $region13: #{_compute_losses.3} parent=0 // pred_fallthru
    _
  // Predicated region
  $region14: #{_compute_losses.3} parent=0 // pred_check
    _
  $region15: #{_compute_losses.3} parent=0 // pred_check_branch
    %89 = sbr.rel (0) target = $region17
  $region16: #{_compute_losses.3} parent=0 // pred_region
    _
  $region17: #{_compute_losses.3} parent=0 // pred_fallthru
    _

</llo_original>
